<compile_context>
chip_gen: v5e
topology: v5e:2x2
jax: 0.10.0
libtpu: 0.0.40
codegen_flags: <defaults>
</compile_context>

<pallas_src>
import functools

import jax
import jax.numpy as jnp
from jax import lax
from jax.experimental import pallas as pl
from jax.experimental.pallas import tpu as pltpu


# ----------------------------------------------------------------------------- kernels
def _sae_resident_kernel(x_ref, w_ref, b_ref, o_ref, *, precision):
    # x_ref: (tm, d_in)   w_ref: (tn, d_in)   b_ref: (1, tn)   o_ref: (tm, tn)
    xf = x_ref[...].astype(jnp.float32)      # matches torch x.to(torch.float32)
    wf = w_ref[...].astype(jnp.float32)
    acts = lax.dot_general(                  # contract d_in of both operands (A @ B^T)
        xf, wf,
        dimension_numbers=(((1,), (1,)), ((), ())),
        preferred_element_type=jnp.float32,
        precision=precision,
    )
    o_ref[...] = jnp.maximum(acts + b_ref[...].astype(jnp.float32), 0.0)


def _sae_ktiled_kernel(x_ref, w_ref, b_ref, o_ref, acc_ref, *, precision):
    # x_ref: (tm, tk)  w_ref: (tn, tk)  b_ref: (1, tn)  o_ref/acc_ref: (tm, tn)
    k = pl.program_id(2)

    @pl.when(k == 0)
    def _():
        acc_ref[...] = jnp.zeros_like(acc_ref)

    xf = x_ref[...].astype(jnp.float32)
    wf = w_ref[...].astype(jnp.float32)
    acc_ref[...] += lax.dot_general(
        xf, wf,
        dimension_numbers=(((1,), (1,)), ((), ())),
        preferred_element_type=jnp.float32,
        precision=precision,
    )

    @pl.when(k == pl.num_programs(2) - 1)
    def _():
        o_ref[...] = jnp.maximum(acc_ref[...] + b_ref[...].astype(jnp.float32), 0.0)


# ----------------------------------------------------------------------------- planning
def _round_up(x, m):
    return (x + m - 1) // m * m


def _vmem_budget_bytes():
    """~75% of physical VMEM (96 MiB v5e/v6e, 48 MiB v7x); 48 MiB safe fallback."""
    try:
        info = pltpu.get_tpu_info()
        cap = int(getattr(info, "vmem_capacity_bytes", 0) or 0)
        if cap > 0:
            return (cap * 3) // 4
    except Exception:
        pass
    return 48 * 1024 * 1024


def _pick_tk(d_in, tk_req):
    """Largest 128-multiple divisor of d_in that is <= tk_req (None if none exists)."""
    k = (min(tk_req, d_in) // 128) * 128
    while k >= 128:
        if d_in % k == 0:
            return k
        k -= 128
    return d_in if d_in <= 128 else None


def _plan_tiles(batch, d_in, d_sae, x_bytes, w_bytes, budget,
                tm_req, tn_req, tk_req, k_tiled):
    pack = max(8, 32 // max(1, x_bytes))          # sublane packing of the x dtype
    tm_cap = _round_up(batch, pack)

    def clamp_tm(v):
        return max(pack, min(_round_up(v, pack), tm_cap))

    def clamp_tn(v):
        return d_sae if d_sae <= v else max(128, (v // 128) * 128)

    def shrink_tm(v):
        cand = max(pack, _round_up(v // 2, pack))
        return cand if cand < v else v

    def shrink_tn(v):
        if d_sae <= 128 or v <= 128:
            return v
        cand = max(128, ((v // 2) // 128) * 128)
        return cand if cand < v else v

    def fit(foot, x_cost, w_cost, tm0, tn0):
        tm, tn = tm0, tn0
        while foot(tm, tn) > budget:
            if w_cost(tn) >= x_cost(tm):
                nxt = (tm, shrink_tn(tn))
                if nxt == (tm, tn):
                    nxt = (shrink_tm(tm), tn)
            else:
                nxt = (shrink_tm(tm), tn)
                if nxt == (tm, tn):
                    nxt = (tm, shrink_tn(tn))
            if nxt == (tm, tn):
                break
            tm, tn = nxt
        return dict(tm=tm, tn=tn, vmem=foot(tm, tn),
                    over=foot(tm, tn) > budget,
                    shrunk=(tm, tn) != (tm0, tn0))

    def resident_plan():
        def foot(tm, tn):
            # 2x x tile + 2x weight strip + 2x out tile + bias (double-buffered)
            return (2 * tm * d_in * x_bytes + 2 * tn * d_in * w_bytes
                    + 2 * tm * tn * 4 + 2 * tn * 4)
        p = fit(foot,
                lambda tm: 2 * tm * d_in * x_bytes,
                lambda tn: 2 * tn * d_in * w_bytes,
                clamp_tm(tm_req), clamp_tn(tn_req))
        p["kind"] = "resident"
        return p

    def ktiled_plan():
        tk = _pick_tk(d_in, tk_req)
        if tk is None:
            return None
        def foot(tm, tn):
            # 2x x tile + 2x weight tile + 2x out tile + 1x f32 accumulator scratch
            return (2 * tm * tk * x_bytes + 2 * tn * tk * w_bytes
                    + 3 * tm * tn * 4 + 2 * tn * 4)
        p = fit(foot,
                lambda tm: 2 * tm * tk * x_bytes,
                lambda tn: 2 * tn * tk * w_bytes,
                clamp_tm(tm_req), clamp_tn(tn_req))
        p["kind"] = "ktiled"
        p["tk"] = tk
        return p

    if k_tiled is True:
        p = ktiled_plan()
        return p if p is not None else resident_plan()
    if k_tiled is False:
        return resident_plan()

    # Auto: prefer the weight-resident schedule unless the weight strip forced
    # the tiles down to uselessly small sizes (huge d_in regime).
    res = resident_plan()
    res_good = (not res["over"]) and (
        not res["shrunk"]
        or (res["tm"] >= min(256, tm_cap) and res["tn"] >= min(512, d_sae)))
    if res_good:
        return res
    kt = ktiled_plan()
    if kt is not None and not kt["over"] and kt["tk"] < d_in:
        return kt
    if not res["over"]:
        return res
    # TODO(synk): d_in has no 128-multiple divisor and even the minimum weight
    # strip overflows the VMEM budget; a masked partial-K block would be needed.
    # Fall back to the smallest schedule and raise the VMEM limit accordingly.
    if kt is not None and kt["vmem"] < res["vmem"]:
        return kt
    return res


# ----------------------------------------------------------------------------- wrapper
def sae_forward(x, w_enc, b_enc, *, tm=512, tn=1024, tk=1024, k_tiled=None,
                precision=lax.Precision.HIGHEST):
    """feature_acts = relu(x.float() @ w_enc.T + b_enc)

    x:     (batch, d_in)   any float dtype (cast to f32 inside the kernel)
    w_enc: (d_sae, d_in)   encoder weight, PyTorch nn.Linear layout (NOT transposed)
    b_enc: (d_sae,)        encoder bias
    returns (batch, d_sae) float32
    """
    batch, d_in = x.shape
    d_sae, d_in_w = w_enc.shape
    assert d_in_w == d_in, "w_enc must be (d_sae, d_in)"
    assert b_enc.shape == (d_sae,), "b_enc must be (d_sae,)"

    x_bytes = jnp.dtype(x.dtype).itemsize
    w_bytes = jnp.dtype(w_enc.dtype).itemsize
    budget = _vmem_budget_bytes()
    plan = _plan_tiles(batch, d_in, d_sae, x_bytes, w_bytes, budget,
                       tm, tn, tk, k_tiled)

    tm_eff, tn_eff = plan["tm"], plan["tn"]
    n_i = pl.cdiv(batch, tm_eff)        # batch tiles
    n_j = pl.cdiv(d_sae, tn_eff)        # d_sae tiles
    b2d = b_enc.reshape(1, d_sae)
    out_shape = jax.ShapeDtypeStruct((batch, d_sae), jnp.float32)
    vmem_limit = int(max(budget, plan["vmem"] + (4 << 20)))

    # Cost estimate reflecting the actual re-stream factors of each schedule.
    out_bytes = batch * d_sae * 4
    if plan["kind"] == "resident":
        bytes_accessed = (n_j * batch * d_in * x_bytes          # x re-read per d_sae strip
                          + d_sae * d_in * w_bytes              # weight read once (resident)
                          + out_bytes + d_sae * 4)
    else:
        bytes_accessed = (n_j * batch * d_in * x_bytes
                          + n_i * d_sae * d_in * w_bytes        # weight re-read per batch tile
                          + out_bytes + d_sae * 4)
    cost = pl.CostEstimate(flops=2 * batch * d_in * d_sae,
                           transcendentals=0,
                           bytes_accessed=int(bytes_accessed))

    if plan["kind"] == "resident":
        kernel = functools.partial(_sae_resident_kernel, precision=precision)
        grid_spec = pltpu.PrefetchScalarGridSpec(
            num_scalar_prefetch=0,
            grid=(n_j, n_i),   # d_sae strips outermost -> weight block resident over batch sweep
            in_specs=[
                pl.BlockSpec((tm_eff, d_in), lambda j, i: (i, 0)),   # x rows
                pl.BlockSpec((tn_eff, d_in), lambda j, i: (j, 0)),   # W_enc strip (constant over i)
                pl.BlockSpec((1, tn_eff), lambda j, i: (0, j)),      # bias panel
            ],
            out_specs=pl.BlockSpec((tm_eff, tn_eff), lambda j, i: (i, j)),
        )
        semantics = ("parallel", "parallel")
    else:
        tk_eff = plan["tk"]
        n_k = d_in // tk_eff
        kernel = functools.partial(_sae_ktiled_kernel, precision=precision)
        grid_spec = pltpu.PrefetchScalarGridSpec(
            num_scalar_prefetch=0,
            grid=(n_i, n_j, n_k),                                 # reduction innermost
            in_specs=[
                pl.BlockSpec((tm_eff, tk_eff), lambda i, j, k: (i, k)),   # x tile
                pl.BlockSpec((tn_eff, tk_eff), lambda i, j, k: (j, k)),   # W_enc panel
                pl.BlockSpec((1, tn_eff), lambda i, j, k: (0, j)),        # bias panel
            ],
            out_specs=pl.BlockSpec((tm_eff, tn_eff), lambda i, j, k: (i, j)),
            scratch_shapes=[pltpu.VMEM((tm_eff, tn_eff), jnp.float32)],
        )
        semantics = ("parallel", "parallel", "arbitrary")

    return pl.pallas_call(
        kernel,
        out_shape=out_shape,
        grid_spec=grid_spec,
        compiler_params=pltpu.CompilerParams(
            dimension_semantics=semantics,
            vmem_limit_bytes=vmem_limit,
        ),
        cost_estimate=cost,
    )(x, w_enc, b2d)


# ----------------------------------------------------------------------------- tests
if __name__ == "__main__":
    # --- Test 1: small shapes consistent with the module (single tile, f32) ---
    d_in, d_sae, batch = 32, 64, 16
    k_x, k_w, k_b = jax.random.split(jax.random.PRNGKey(0), 3)
    bound = 1.0 / (d_in ** 0.5)                       # nn.Linear-style init bound
    w_enc = jax.random.uniform(k_w, (d_sae, d_in), jnp.float32, -bound, bound)
    b_enc = jax.random.uniform(k_b, (d_sae,), jnp.float32, -bound, bound)
    x = jax.random.normal(k_x, (batch, d_in), jnp.float32)

    out = jax.block_until_ready(sae_forward(x, w_enc, b_enc))
    ref = jnp.maximum(
        jnp.matmul(x, w_enc.T, precision=lax.Precision.HIGHEST) + b_enc, 0.0)
    assert out.shape == (batch, d_sae)
    assert jnp.allclose(out, ref, atol=1e-4, rtol=1e-4)

    # --- Test 2: weight-resident path with batch tiling, a partial final row
    # tile (300 % 128 != 0) and a bf16 input cast to f32 inside the kernel ----
    d_in2, d_sae2, batch2 = 256, 512, 300
    k_x2, k_w2, k_b2 = jax.random.split(jax.random.PRNGKey(1), 3)
    w2 = jax.random.normal(k_w2, (d_sae2, d_in2), jnp.float32) * 0.02
    b2 = jax.random.normal(k_b2, (d_sae2,), jnp.float32) * 0.02
    x2 = jax.random.normal(k_x2, (batch2, d_in2), jnp.float32).astype(jnp.bfloat16)

    out2 = jax.block_until_ready(sae_forward(x2, w2, b2, tm=128))
    ref2 = jnp.maximum(
        jnp.matmul(x2.astype(jnp.float32), w2.T,
                   precision=lax.Precision.HIGHEST) + b2, 0.0)
    assert out2.shape == (batch2, d_sae2)
    assert jnp.allclose(out2, ref2, atol=1e-2, rtol=1e-2)

    # --- Test 3: K-tiled accumulator path (forced), exercises N and K tiling --
    d_in3, d_sae3, batch3 = 512, 256, 64
    k_x3, k_w3, k_b3 = jax.random.split(jax.random.PRNGKey(2), 3)
    w3 = jax.random.normal(k_w3, (d_sae3, d_in3), jnp.float32) * 0.02
    b3 = jax.random.normal(k_b3, (d_sae3,), jnp.float32) * 0.02
    x3 = jax.random.normal(k_x3, (batch3, d_in3), jnp.float32)

    out3 = jax.block_until_ready(
        sae_forward(x3, w3, b3, tm=64, tn=128, tk=128, k_tiled=True))
    ref3 = jnp.maximum(
        jnp.matmul(x3, w3.T, precision=lax.Precision.HIGHEST) + b3, 0.0)
    assert out3.shape == (batch3, d_sae3)
    assert jnp.allclose(out3, ref3, atol=1e-4, rtol=1e-4)

    print("KERNEL_OK")
</pallas_src>

<mosaic_0001>
module attributes {stable_mosaic.version = 11 : i64} {
  func.func @_sae_resident_kernel(%arg0: i32, %arg1: i32, %arg2: memref<16x32xf32, #tpu.memory_space<vmem>>, %arg3: memref<64x32xf32, #tpu.memory_space<vmem>>, %arg4: memref<1x64xf32, #tpu.memory_space<vmem>>, %arg5: memref<16x64xf32, #tpu.memory_space<vmem>>) attributes {dimension_semantics = [#tpu.dimension_semantics<parallel>, #tpu.dimension_semantics<parallel>], iteration_bounds = array<i64: 1, 1>, scalar_prefetch = 0 : i64, scratch_operands = 0 : i64, tpu.core_type = #tpu.core_type<tc>, window_params = [{transform_indices = @transform_0, window_bounds = array<i64: 16, 32>}, {transform_indices = @transform_1, window_bounds = array<i64: 64, 32>}, {transform_indices = @transform_2, window_bounds = array<i64: 1, 64>}, {transform_indices = @transform_3, window_bounds = array<i64: 16, 64>}]} {
    %c0 = arith.constant 0 : index
    %c0_0 = arith.constant 0 : index
    %0 = vector.load %arg2[%c0, %c0_0] : memref<16x32xf32, #tpu.memory_space<vmem>>, vector<16x32xf32>
    %c0_1 = arith.constant 0 : index
    %c0_2 = arith.constant 0 : index
    %1 = vector.load %arg3[%c0_1, %c0_2] : memref<64x32xf32, #tpu.memory_space<vmem>>, vector<64x32xf32>
    %cst = arith.constant dense<0.000000e+00> : vector<16x64xf32>
    %2 = tpu.matmul %0, %1, %cst {dimension_numbers = #tpu.dot_dimension_numbers<[1], [1], [0], [0], [0, 0, 1, 0], [], []>, precision = #tpu.contract_precision<fp32>} : vector<16x32xf32>, vector<64x32xf32>, vector<16x64xf32> -> vector<16x64xf32>
    %c0_3 = arith.constant 0 : index
    %c0_4 = arith.constant 0 : index
    %3 = vector.load %arg4[%c0_3, %c0_4] : memref<1x64xf32, #tpu.memory_space<vmem>>, vector<1x64xf32>
    %4 = vector.broadcast %3 : vector<1x64xf32> to vector<16x64xf32>
    %5 = arith.addf %2, %4 : vector<16x64xf32>
    %cst_5 = arith.constant 0.000000e+00 : f32
    %6 = vector.broadcast %cst_5 : f32 to vector<16x64xf32>
    %7 = arith.maximumf %5, %6 : vector<16x64xf32>
    %c0_6 = arith.constant 0 : index
    %c0_7 = arith.constant 0 : index
    %8 = vector.load %arg5[%c0_6, %c0_7] : memref<16x64xf32, #tpu.memory_space<vmem>>, vector<16x64xf32>
    tpu.vector_store %arg5[%c0_6, %c0_7], %7 {strides = array<i32>} : memref<16x64xf32, #tpu.memory_space<vmem>>, vector<16x64xf32>,
    return
  }
  func.func @transform_0(%arg0: i32, %arg1: i32) -> (i32, i32) {
    %c0_i32 = arith.constant 0 : i32
    %c0_i32_0 = arith.constant 0 : i32
    return %arg1, %c0_i32 : i32, i32
  }
  func.func @transform_1(%arg0: i32, %arg1: i32) -> (i32, i32) {
    %c0_i32 = arith.constant 0 : i32
    %c0_i32_0 = arith.constant 0 : i32
    return %arg0, %c0_i32 : i32, i32
  }
  func.func @transform_2(%arg0: i32, %arg1: i32) -> (i32, i32) {
    %c0_i32 = arith.constant 0 : i32
    %c0_i32_0 = arith.constant 0 : i32
    return %c0_i32, %arg0 : i32, i32
  }
  func.func @transform_3(%arg0: i32, %arg1: i32) -> (i32, i32) {
    %c0_i32 = arith.constant 0 : i32
    return %arg1, %arg0 : i32, i32
  }
}

</mosaic_0001>

<llo_original>
// kernel: tpu_custom_call.1
$region0: #{tpu_custom_call.1}
  #allocation0 [shape = 'u32[]', space=smem, size = 0x4, offset = 0x4, fixed_abs, tag = 'smem constant byte address 0x4 - core index']
  #allocation1 [shape = 'u32[72,128]{1,0:T(1,128)}', space=vmem, size = 0x9000, scoped, tag = 'internal scratch']
  %s0 = inlined_call_operand.vmem [shape: f32[16,32], index: 0, kind: input, shape index: {}]
  %s1 = inlined_call_operand.vmem [shape: f32[64,32], index: 1, kind: input, shape index: {}]
  %s2 = inlined_call_operand.vmem [shape: f32[1,64], index: 2, kind: input, shape index: {}]
  %s3 = inlined_call_operand.hbm [shape: f32[16,64], index: 3, kind: output, shape index: {}]
  %s4 = sld [smem:[#allocation0]]
  $region22: #{tpu_custom_call.1} parent=0
    _
  %s6 = ssub.s32 1, %s4
  %s7 = scalar_select 0, %s6, %s4
  $region1: #{tpu_custom_call.1} parent=0
    #allocation2 [shape = 'u8[8192]{0}', space=vmem, size = 0x2000, scoped, tag = 'output window, operand 0, single buffered']
    #allocation3 [shape = 's32[1]{0}', space=sflag, size = 0x4, scoped, tag = 'scoped memory for tpu_custom_call.1']
    %8 = vsyncpa [#allocation3], 0
    // Predicated region
    $region2: #{tpu_custom_call.1} parent=1 // pred_check
      _
    $region3: #{tpu_custom_call.1} parent=1 // pred_check_branch
      %10 = sbr.rel (0) target = $region5
    $region4: #{tpu_custom_call.1} parent=1 // pred_region
      _
    $region5: #{tpu_custom_call.1} parent=1 // pred_fallthru
      _
    // Predicated region
    $region6: #{tpu_custom_call.1} parent=1 // pred_check
      _
    $region7: #{tpu_custom_call.1} parent=1 // pred_check_branch
      %12 = sbr.rel (0) target = $region9
    $region8: #{tpu_custom_call.1} parent=1 // pred_region
      _
    $region9: #{tpu_custom_call.1} parent=1 // pred_fallthru
      _
    // Predicated region
    $region10: #{tpu_custom_call.1} parent=1 // pred_check
      _
    $region11: #{tpu_custom_call.1} parent=1 // pred_check_branch
      %14 = sbr.rel (0) target = $region13
    $region12: #{tpu_custom_call.1} parent=1 // pred_region
      _
    $region13: #{tpu_custom_call.1} parent=1 // pred_fallthru
      _
    %v15 = vld [vmem:[%s0] sm:$0xff]
    %v16 = vld [vmem:[%s0 + $0x8] sm:$0xff]
    %v17 = vld [vmem:[%s1] sm:$0xff]
    %v18 = vld [vmem:[%s1 + $0x8] sm:$0xff]
    %v19 = vld [vmem:[%s1 + $0x10] sm:$0xff]
    %v20 = vld [vmem:[%s1 + $0x18] sm:$0xff]
    %v21 = vld [vmem:[%s1 + $0x20] sm:$0xff]
    %v22 = vld [vmem:[%s1 + $0x28] sm:$0xff]
    %v23 = vld [vmem:[%s1 + $0x30] sm:$0xff]
    %v24 = vld [vmem:[%s1 + $0x38] sm:$0xff]
    %v25 = vld [vmem:[%s2] sm:$0x1]
    %v27 = vperm.slane %v25, 0
    %vm29 = vcmask 261120
    %v31 = vsel %vm29, %v15, 0
    %v34 = vsel %vm29, %v16, 0
    %v37 = vsel %vm29, %v17, 0
    %v40 = vsel %vm29, %v18, 0
    %v43 = vsel %vm29, %v19, 0
    %v46 = vsel %vm29, %v20, 0
    %v49 = vsel %vm29, %v21, 0
    %v52 = vsel %vm29, %v22, 0
    %v55 = vsel %vm29, %v23, 0
    %v58 = vsel %vm29, %v24, 0
    %60 = vmatpush.xpose.msra.mxu0 0.0
    %61 = vmatpush.xpose.msra.mxu0 0.0
    %62 = vmatpush.xpose.msra.mxu0 0.0
    %63 = vmatpush.xpose.msra.mxu0 0.0
    %64 = vmatpush.xpose.msra.mxu0 0.0
    %65 = vmatpush.xpose.msra.mxu0 0.0
    %66 = vmatpush.xpose.msra.mxu0 0.0
    %67 = vmatpush.xpose.msra.mxu0 0.0
    %v68 = vand.u32 %v58, 4294901760
    %69 = vmatpush.xpose.msra.mxu0 %v68
    %v70 = vand.u32 %v55, 4294901760
    %71 = vmatpush.xpose.msra.mxu0 %v70
    %v72 = vand.u32 %v52, 4294901760
    %73 = vmatpush.xpose.msra.mxu0 %v72
    %v74 = vand.u32 %v49, 4294901760
    %75 = vmatpush.xpose.msra.mxu0 %v74
    %v76 = vand.u32 %v46, 4294901760
    %77 = vmatpush.xpose.msra.mxu0 %v76
    %v78 = vand.u32 %v43, 4294901760
    %79 = vmatpush.xpose.msra.mxu0 %v78
    %v80 = vand.u32 %v40, 4294901760
    %81 = vmatpush.xpose.msra.mxu0 %v80
    %v82 = vand.u32 %v37, 4294901760
    %83 = vmatpush.xpose.msra.mxu0 %v82
    %v84 = vand.u32 %v31, 4294901760
    %v85 = vsub.f32 %v31, %v84
    %v86 = vand.u32 %v85, 4294901760
    %v87 = vsub.f32 %v85, %v86
    %v88 = vand.u32 %v87, 4294901760
    %89 = vmatmul.f32.gmra.mxu0 %v88
    %v90 = vpop.f32.mrf.mxu0
    %v91 = vadd.f32 %v27, %v90
    %v92 = vand.u32 %v34, 4294901760
    %v93 = vsub.f32 %v34, %v92
    %v94 = vand.u32 %v93, 4294901760
    %v95 = vsub.f32 %v93, %v94
    %v96 = vand.u32 %v95, 4294901760
    %97 = vmatmul.f32.gmra.mxu0 %v96
    %v98 = vpop.f32.mrf.mxu0
    %v99 = vadd.f32 %v27, %v98
    %100 = vdwg.mxu0
    %101 = vmatpush.xpose.msra.mxu0 0.0
    %102 = vmatpush.xpose.msra.mxu0 0.0
    %103 = vmatpush.xpose.msra.mxu0 0.0
    %104 = vmatpush.xpose.msra.mxu0 0.0
    %105 = vmatpush.xpose.msra.mxu0 0.0
    %106 = vmatpush.xpose.msra.mxu0 0.0
    %107 = vmatpush.xpose.msra.mxu0 0.0
    %108 = vmatpush.xpose.msra.mxu0 0.0
    %v109 = vand.u32 %v58, 4294901760
    %v110 = vsub.f32 %v58, %v109
    %v111 = vand.u32 %v110, 4294901760
    %v112 = vsub.f32 %v110, %v111
    %v113 = vand.u32 %v112, 4294901760
    %114 = vmatpush.xpose.msra.mxu0 %v113
    %v115 = vand.u32 %v55, 4294901760
    %v116 = vsub.f32 %v55, %v115
    %v117 = vand.u32 %v116, 4294901760
    %v118 = vsub.f32 %v116, %v117
    %v119 = vand.u32 %v118, 4294901760
    %120 = vmatpush.xpose.msra.mxu0 %v119
    %v121 = vand.u32 %v52, 4294901760
    %v122 = vsub.f32 %v52, %v121
    %v123 = vand.u32 %v122, 4294901760
    %v124 = vsub.f32 %v122, %v123
    %v125 = vand.u32 %v124, 4294901760
    %126 = vmatpush.xpose.msra.mxu0 %v125
    %v127 = vand.u32 %v49, 4294901760
    %v128 = vsub.f32 %v49, %v127
    %v129 = vand.u32 %v128, 4294901760
    %v130 = vsub.f32 %v128, %v129
    %v131 = vand.u32 %v130, 4294901760
    %132 = vmatpush.xpose.msra.mxu0 %v131
    %v133 = vand.u32 %v46, 4294901760
    %v134 = vsub.f32 %v46, %v133
    %v135 = vand.u32 %v134, 4294901760
    %v136 = vsub.f32 %v134, %v135
    %v137 = vand.u32 %v136, 4294901760
    %138 = vmatpush.xpose.msra.mxu0 %v137
    %v139 = vand.u32 %v43, 4294901760
    %v140 = vsub.f32 %v43, %v139
    %v141 = vand.u32 %v140, 4294901760
    %v142 = vsub.f32 %v140, %v141
    %v143 = vand.u32 %v142, 4294901760
    %144 = vmatpush.xpose.msra.mxu0 %v143
    %v145 = vand.u32 %v40, 4294901760
    %v146 = vsub.f32 %v40, %v145
    %v147 = vand.u32 %v146, 4294901760
    %v148 = vsub.f32 %v146, %v147
    %v149 = vand.u32 %v148, 4294901760
    %150 = vmatpush.xpose.msra.mxu0 %v149
    %v151 = vand.u32 %v37, 4294901760
    %v152 = vsub.f32 %v37, %v151
    %v153 = vand.u32 %v152, 4294901760
    %v154 = vsub.f32 %v152, %v153
    %v155 = vand.u32 %v154, 4294901760
    %156 = vmatpush.xpose.msra.mxu0 %v155
    %v157 = vand.u32 %v31, 4294901760
    %158 = vmatmul.f32.gmra.mxu0 %v157
    %v159 = vpop.f32.mrf.mxu0
    %v160 = vadd.f32 %v91, %v159
    %v161 = vand.u32 %v34, 4294901760
    %162 = vmatmul.f32.gmra.mxu0 %v161
    %v163 = vpop.f32.mrf.mxu0
    %v164 = vadd.f32 %v99, %v163
    %165 = vdwg.mxu0
    %166 = vmatpush.xpose.msra.mxu0 0.0
    %167 = vmatpush.xpose.msra.mxu0 0.0
    %168 = vmatpush.xpose.msra.mxu0 0.0
    %169 = vmatpush.xpose.msra.mxu0 0.0
    %170 = vmatpush.xpose.msra.mxu0 0.0
    %171 = vmatpush.xpose.msra.mxu0 0.0
    %172 = vmatpush.xpose.msra.mxu0 0.0
    %173 = vmatpush.xpose.msra.mxu0 0.0
    %v174 = vand.u32 %v58, 4294901760
    %v175 = vsub.f32 %v58, %v174
    %176 = vmatpush.xpose.msra.mxu0 %v175
    %v177 = vand.u32 %v55, 4294901760
    %v178 = vsub.f32 %v55, %v177
    %179 = vmatpush.xpose.msra.mxu0 %v178
    %v180 = vand.u32 %v52, 4294901760
    %v181 = vsub.f32 %v52, %v180
    %182 = vmatpush.xpose.msra.mxu0 %v181
    %v183 = vand.u32 %v49, 4294901760
    %v184 = vsub.f32 %v49, %v183
    %185 = vmatpush.xpose.msra.mxu0 %v184
    %v186 = vand.u32 %v46, 4294901760
    %v187 = vsub.f32 %v46, %v186
    %188 = vmatpush.xpose.msra.mxu0 %v187
    %v189 = vand.u32 %v43, 4294901760
    %v190 = vsub.f32 %v43, %v189
    %191 = vmatpush.xpose.msra.mxu0 %v190
    %v192 = vand.u32 %v40, 4294901760
    %v193 = vsub.f32 %v40, %v192
    %194 = vmatpush.xpose.msra.mxu0 %v193
    %v195 = vand.u32 %v37, 4294901760
    %v196 = vsub.f32 %v37, %v195
    %197 = vmatpush.xpose.msra.mxu0 %v196
    %v198 = vand.u32 %v31, 4294901760
    %v199 = vsub.f32 %v31, %v198
    %200 = vmatmul.f32.gmra.mxu0 %v199
    %v201 = vpop.f32.mrf.mxu0
    %v202 = vadd.f32 %v160, %v201
    %v203 = vand.u32 %v34, 4294901760
    %v204 = vsub.f32 %v34, %v203
    %205 = vmatmul.f32.gmra.mxu0 %v204
    %v206 = vpop.f32.mrf.mxu0
    %v207 = vadd.f32 %v164, %v206
    %208 = vdwg.mxu0
    %209 = vmatpush.xpose.msra.mxu0 0.0
    %210 = vmatpush.xpose.msra.mxu0 0.0
    %211 = vmatpush.xpose.msra.mxu0 0.0
    %212 = vmatpush.xpose.msra.mxu0 0.0
    %213 = vmatpush.xpose.msra.mxu0 0.0
    %214 = vmatpush.xpose.msra.mxu0 0.0
    %215 = vmatpush.xpose.msra.mxu0 0.0
    %216 = vmatpush.xpose.msra.mxu0 0.0
    %v217 = vand.u32 %v58, 4294901760
    %218 = vmatpush.xpose.msra.mxu0 %v217
    %v219 = vand.u32 %v55, 4294901760
    %220 = vmatpush.xpose.msra.mxu0 %v219
    %v221 = vand.u32 %v52, 4294901760
    %222 = vmatpush.xpose.msra.mxu0 %v221
    %v223 = vand.u32 %v49, 4294901760
    %224 = vmatpush.xpose.msra.mxu0 %v223
    %v225 = vand.u32 %v46, 4294901760
    %226 = vmatpush.xpose.msra.mxu0 %v225
    %v227 = vand.u32 %v43, 4294901760
    %228 = vmatpush.xpose.msra.mxu0 %v227
    %v229 = vand.u32 %v40, 4294901760
    %230 = vmatpush.xpose.msra.mxu0 %v229
    %v231 = vand.u32 %v37, 4294901760
    %232 = vmatpush.xpose.msra.mxu0 %v231
    %v233 = vand.u32 %v31, 4294901760
    %v234 = vsub.f32 %v31, %v233
    %v235 = vand.u32 %v234, 4294901760
    %236 = vmatmul.f32.gmra.mxu0 %v235
    %v237 = vpop.f32.mrf.mxu0
    %v238 = vadd.f32 %v202, %v237
    %v239 = vand.u32 %v34, 4294901760
    %v240 = vsub.f32 %v34, %v239
    %v241 = vand.u32 %v240, 4294901760
    %242 = vmatmul.f32.gmra.mxu0 %v241
    %v243 = vpop.f32.mrf.mxu0
    %v244 = vadd.f32 %v207, %v243
    %245 = vdwg.mxu0
    %246 = vmatpush.xpose.msra.mxu0 0.0
    %247 = vmatpush.xpose.msra.mxu0 0.0
    %248 = vmatpush.xpose.msra.mxu0 0.0
    %249 = vmatpush.xpose.msra.mxu0 0.0
    %250 = vmatpush.xpose.msra.mxu0 0.0
    %251 = vmatpush.xpose.msra.mxu0 0.0
    %252 = vmatpush.xpose.msra.mxu0 0.0
    %253 = vmatpush.xpose.msra.mxu0 0.0
    %v254 = vand.u32 %v58, 4294901760
    %v255 = vsub.f32 %v58, %v254
    %v256 = vand.u32 %v255, 4294901760
    %257 = vmatpush.xpose.msra.mxu0 %v256
    %v258 = vand.u32 %v55, 4294901760
    %v259 = vsub.f32 %v55, %v258
    %v260 = vand.u32 %v259, 4294901760
    %261 = vmatpush.xpose.msra.mxu0 %v260
    %v262 = vand.u32 %v52, 4294901760
    %v263 = vsub.f32 %v52, %v262
    %v264 = vand.u32 %v263, 4294901760
    %265 = vmatpush.xpose.msra.mxu0 %v264
    %v266 = vand.u32 %v49, 4294901760
    %v267 = vsub.f32 %v49, %v266
    %v268 = vand.u32 %v267, 4294901760
    %269 = vmatpush.xpose.msra.mxu0 %v268
    %v270 = vand.u32 %v46, 4294901760
    %v271 = vsub.f32 %v46, %v270
    %v272 = vand.u32 %v271, 4294901760
    %273 = vmatpush.xpose.msra.mxu0 %v272
    %v274 = vand.u32 %v43, 4294901760
    %v275 = vsub.f32 %v43, %v274
    %v276 = vand.u32 %v275, 4294901760
    %277 = vmatpush.xpose.msra.mxu0 %v276
    %v278 = vand.u32 %v40, 4294901760
    %v279 = vsub.f32 %v40, %v278
    %v280 = vand.u32 %v279, 4294901760
    %281 = vmatpush.xpose.msra.mxu0 %v280
    %v282 = vand.u32 %v37, 4294901760
    %v283 = vsub.f32 %v37, %v282
    %v284 = vand.u32 %v283, 4294901760
    %285 = vmatpush.xpose.msra.mxu0 %v284
    %v286 = vand.u32 %v31, 4294901760
    %287 = vmatmul.f32.gmra.mxu0 %v286
    %v288 = vpop.f32.mrf.mxu0
    %v289 = vadd.f32 %v238, %v288
    %v290 = vand.u32 %v34, 4294901760
    %291 = vmatmul.f32.gmra.mxu0 %v290
    %v292 = vpop.f32.mrf.mxu0
    %v293 = vadd.f32 %v244, %v292
    %294 = vdwg.mxu0
    %295 = vmatpush.xpose.msra.mxu0 0.0
    %296 = vmatpush.xpose.msra.mxu0 0.0
    %297 = vmatpush.xpose.msra.mxu0 0.0
    %298 = vmatpush.xpose.msra.mxu0 0.0
    %299 = vmatpush.xpose.msra.mxu0 0.0
    %300 = vmatpush.xpose.msra.mxu0 0.0
    %301 = vmatpush.xpose.msra.mxu0 0.0
    %302 = vmatpush.xpose.msra.mxu0 0.0
    %v303 = vand.u32 %v58, 4294901760
    %304 = vmatpush.xpose.msra.mxu0 %v303
    %v305 = vand.u32 %v55, 4294901760
    %306 = vmatpush.xpose.msra.mxu0 %v305
    %v307 = vand.u32 %v52, 4294901760
    %308 = vmatpush.xpose.msra.mxu0 %v307
    %v309 = vand.u32 %v49, 4294901760
    %310 = vmatpush.xpose.msra.mxu0 %v309
    %v311 = vand.u32 %v46, 4294901760
    %312 = vmatpush.xpose.msra.mxu0 %v311
    %v313 = vand.u32 %v43, 4294901760
    %314 = vmatpush.xpose.msra.mxu0 %v313
    %v315 = vand.u32 %v40, 4294901760
    %316 = vmatpush.xpose.msra.mxu0 %v315
    %v317 = vand.u32 %v37, 4294901760
    %318 = vmatpush.xpose.msra.mxu0 %v317
    %v319 = vand.u32 %v31, 4294901760
    %320 = vmatmul.f32.gmra.mxu0 %v319
    %v321 = vpop.f32.mrf.mxu0
    %v322 = vadd.f32 %v289, %v321
    %v323 = vand.u32 %v34, 4294901760
    %324 = vmatmul.f32.gmra.mxu0 %v323
    %v325 = vpop.f32.mrf.mxu0
    %v326 = vadd.f32 %v293, %v325
    %327 = vdwg.mxu0
    %v328 = vmax.f32 %v322, 0.0
    %v329 = vmax.f32 %v326, 0.0
    %vm330 = vcmask 523264
    %331 = vst.msk [vmem:[#allocation2] sm:$0xff] %vm330, %v328
    %332 = vst.msk [vmem:[#allocation2 + $0x8] sm:$0xff] %vm330, %v329
    // Predicated region
    $region14: #{tpu_custom_call.1} parent=1 // pred_check
      _
    $region15: #{tpu_custom_call.1} parent=1 // pred_check_branch
      %334 = sbr.rel (0) target = $region17
    $region16: #{tpu_custom_call.1} parent=1 // pred_region
      %336 = vsyncadd [#allocation3], 0
      %s337 = sshll.u32 [#allocation2], 4
      %s338 = int_to_ptr.vmem [resolvable:$true] %s337
      %s339 = sshll.u32 %s3, 4
      %s340 = int_to_ptr.hbm [resolvable:$true] %s339
      %345 = dma.vmem_to_hbm [thread:$0]  %s338, 256, %s340, [#allocation3], 128, 128, 8
    $region17: #{tpu_custom_call.1} parent=1 // pred_fallthru
      _
    // Predicated region
    $region18: #{tpu_custom_call.1} parent=1 // pred_check
      _
    $region19: #{tpu_custom_call.1} parent=1 // pred_check_branch
      %347 = sbr.rel (0) target = $region21
    $region20: #{tpu_custom_call.1} parent=1 // pred_region
      %349 = dma.done [#allocation3], 256
    $region21: #{tpu_custom_call.1} parent=1 // pred_fallthru
      _
    %350 = vsyncpa [#allocation3], 1

</llo_original>
